<compile_context>
chip_gen: v6e
topology: v6e:2x2x1
jax: 0.10.0
libtpu: 0.0.40
codegen_flags: <defaults>
</compile_context>

<pallas_src>
import functools

import jax
import jax.numpy as jnp
from jax.experimental import pallas as pl
from jax.experimental.pallas import tpu as pltpu


def _patch_merging_kernel(x_ref, w_ref, b_ref, o_ref, *, c, wh, wc, grp):
    """One block of image-row pairs.

    x_ref: (TR, 2*W*C)     each row = [even-H image row | odd-H image row]
    w_ref: (4C, 2C)        gamma-folded projection, rows ordered [x0|x2|x1|x3]
    b_ref: (1, 2C)         beta @ W (LayerNorm bias folded through the linear)
    o_ref: (TR, (W/2)*2C)  per row-pair: W/2 merged-token outputs, lane-major
    """
    c2 = 2 * c
    gw = grp * c2                     # lanes per token group (128-multiple when grp > 1)
    inv_4c = 1.0 / (4.0 * c)

    w = w_ref[...]                    # hoisted loop-invariant loads
    bias = b_ref[...]                 # (1, 2C) f32

    # Static loop over wh/grp independent token groups (<= ~32 for Swin-scale
    # resolutions).  All ref accesses are full-height slabs; for the aligned
    # `grp` choice the lane offsets are multiples of 128 (unmasked vld/vst).
    for gi in range(wh // grp):
        a0 = gi * gw                  # even-H half: [x0|x2] slabs of this group
        b0 = wc + gi * gw             # odd-H  half: [x1|x3] slabs of this group
        xa = x_ref[:, a0:a0 + gw].astype(jnp.float32)
        xb = x_ref[:, b0:b0 + gw].astype(jnp.float32)

        outs = []
        for t in range(grp):          # grp in {1, 2, 4}: value-level lane slices only
            lo, hi = t * c2, (t + 1) * c2
            xab = jnp.concatenate([xa[:, lo:hi], xb[:, lo:hi]], axis=-1)  # (TR, 4C)

            # LayerNorm over the 4C features of each merged token: one-pass
            # f32 stats, biased variance, eps=1e-5 (matches torch.nn.LayerNorm).
            s = jnp.sum(xab, axis=-1, keepdims=True)
            sq = jnp.sum(xab * xab, axis=-1, keepdims=True)
            mean = s * inv_4c
            var = jnp.maximum(sq * inv_4c - mean * mean, 0.0)
            inv = jax.lax.rsqrt(var + 1e-5)
            xn = ((xab - mean) * inv).astype(w.dtype)

            # Single fused Linear(4C -> 2C): one MXU dot per group member,
            # K = 4C, M = TR (full block height), f32 accumulation.
            outs.append(jnp.dot(xn, w, preferred_element_type=jnp.float32) + bias)

        og = outs[0] if grp == 1 else jnp.concatenate(outs, axis=-1)   # (TR, grp*2C)
        o_ref[:, a0:a0 + gw] = og.astype(o_ref.dtype)                  # lane-dense store


def _pick_group(c2, wh):
    """Smallest group size g with (g*2C) % 128 == 0 and g | wh so every loop
    load/store is lane-tile aligned; falls back to 1 (masked partial stores)."""
    if c2 % 128 == 0:
        return 1
    for g in (2, 4):
        if (g * c2) % 128 == 0 and wh % g == 0:
            return g
    return 1


def _pick_block_rows(bh, bytes_per_row, sublane, db_budget, target_block_bytes):
    """Image-row pairs per block: ~target_block_bytes per block, capped by the
    double-buffered VMEM budget, >= 2 grid steps when possible (v7x: 2 TCs and
    DMA/compute overlap), and a multiple of the sublane tile."""
    cap = max(1, db_budget // (2 * bytes_per_row))            # double-buffered
    want = max(sublane, target_block_bytes // bytes_per_row)
    tr = min(bh, cap, want)
    if bh >= 2 * sublane:
        tr = min(tr, -(-bh // 2))                             # keep >= 2 blocks
    if tr >= bh:
        return bh
    tr = max(sublane, (tr // sublane) * sublane)
    return min(tr, bh)


def _vmem_capacity_bytes():
    try:
        cap = int(getattr(pltpu.get_tpu_info(), "vmem_capacity_bytes"))
        if cap > 0:
            return cap
    except Exception:
        pass
    return 64 * 1024 * 1024                                   # v7x-safe fallback


def patch_merging(x, input_resolution, gamma, beta, w_reduction, *,
                  block_rows=None, mxu_dtype=None,
                  target_block_bytes=4 * 1024 * 1024):
    """x: (B, H*W, C) -> (B, H*W//4, 2*C).  w_reduction is (4C, 2C) ("in x out",
    i.e. the transpose of the torch Linear weight)."""
    h, w = input_resolution
    b, seq_len, c = x.shape
    assert seq_len == h * w, "input feature has wrong size"
    assert h % 2 == 0 and w % 2 == 0, f"x size ({h}*{w}) are not even."

    hh, wh = h // 2, w // 2
    bh = b * hh                      # number of image-row pairs (= merged H rows)
    c2, c4 = 2 * c, 4 * c
    wc = w * c                       # lanes per original image row (= wh * 2C)

    # ---- fold LayerNorm affine into the projection (tiny, wrapper-side) ----
    w_f = w_reduction.astype(jnp.float32)                    # (4C, 2C)
    w_g = gamma.astype(jnp.float32)[:, None] * w_f           # gamma folded into rows
    bias = beta.astype(jnp.float32)[None, :] @ w_f           # (1, 2C)
    # Kernel feature order per token is [x0 | x2 | x1 | x3]; reorder W rows.
    w_k = jnp.concatenate([w_g[0:c], w_g[2 * c:3 * c],
                           w_g[c:2 * c], w_g[3 * c:4 * c]], axis=0)   # (4C, 2C)

    if mxu_dtype is None:
        mxu_dtype = jnp.bfloat16 if x.dtype == jnp.bfloat16 else jnp.float32
    w_k = w_k.astype(mxu_dtype)

    # ---- free reshape: one row per (even-H, odd-H) image-row pair ----
    xr = x.reshape(bh, 2 * wc)

    itemsize = jnp.dtype(x.dtype).itemsize
    sublane = 16 if itemsize <= 2 else 8
    bytes_per_row = itemsize * 2 * wc + itemsize * wc        # in + out per row pair

    vmem_cap = _vmem_capacity_bytes()
    vmem_limit = int(min(vmem_cap * 3 // 4, 64 * 1024 * 1024))   # ~64MiB v5e/v6e, ~48MiB v7x
    db_budget = min(24 * 1024 * 1024, vmem_limit // 2)           # double-buffered blocks

    if block_rows is None:
        block_rows = _pick_block_rows(bh, bytes_per_row, sublane,
                                      db_budget, target_block_bytes)
    tr = block_rows
    grp = _pick_group(c2, wh)

    kernel = functools.partial(_patch_merging_kernel, c=c, wh=wh, wc=wc, grp=grp)
    out = pl.pallas_call(
        kernel,
        out_shape=jax.ShapeDtypeStruct((bh, wh * c2), x.dtype),
        grid_spec=pltpu.PrefetchScalarGridSpec(
            num_scalar_prefetch=0,
            grid=(pl.cdiv(bh, tr),),
            in_specs=[
                pl.BlockSpec((tr, 2 * wc), lambda i: (i, 0)),
                pl.BlockSpec((c4, c2), lambda i: (0, 0)),
                pl.BlockSpec((1, c2), lambda i: (0, 0)),
            ],
            out_specs=pl.BlockSpec((tr, wh * c2), lambda i: (i, 0)),
        ),
        compiler_params=pltpu.CompilerParams(
            dimension_semantics=("parallel",),               # v7x: split across 2 TCs
            vmem_limit_bytes=vmem_limit,
        ),
    )(xr, w_k, bias)

    # Free reshape: rows are (b, hh), lanes are (ww, 2C) -> (B, (H/2)*(W/2), 2C)
    return out.reshape(b, hh * wh, c2)


def _reference(x, input_resolution, gamma, beta, w_reduction):
    h, w = input_resolution
    b, _, c = x.shape
    xv = x.reshape(b, h, w, c)
    x0 = xv[:, 0::2, 0::2, :]
    x1 = xv[:, 1::2, 0::2, :]
    x2 = xv[:, 0::2, 1::2, :]
    x3 = xv[:, 1::2, 1::2, :]
    xm = jnp.concatenate([x0, x1, x2, x3], axis=-1).reshape(b, -1, 4 * c)
    mean = jnp.mean(xm, axis=-1, keepdims=True)
    var = jnp.mean((xm - mean) ** 2, axis=-1, keepdims=True)
    xn = (xm - mean) / jnp.sqrt(var + 1e-5)
    y = xn * gamma + beta
    return jnp.einsum("blk,kn->bln", y, w_reduction)


if __name__ == "__main__":
    key = jax.random.PRNGKey(0)

    def run_case(b, h, w, c, sub):
        kx, kw, kg, kb = jax.random.split(jax.random.fold_in(key, sub), 4)
        x = jax.random.normal(kx, (b, h * w, c), dtype=jnp.float32)
        w_red = (jax.random.normal(kw, (4 * c, 2 * c), dtype=jnp.float32)
                 * (1.0 / jnp.sqrt(4.0 * c)))
        gamma = 1.0 + 0.1 * jax.random.normal(kg, (4 * c,), dtype=jnp.float32)
        beta = 0.1 * jax.random.normal(kb, (4 * c,), dtype=jnp.float32)
        out = jax.block_until_ready(patch_merging(x, (h, w), gamma, beta, w_red))
        ref = _reference(x, (h, w), gamma, beta, w_red)
        assert out.shape == (b, (h // 2) * (w // 2), 2 * c)
        err = float(jnp.max(jnp.abs(out - ref)))
        assert jnp.allclose(out, ref, atol=5e-4, rtol=5e-4), (b, h, w, c, err)

    # Main config: B=2, H=W=8, C=32  (grouped path: grp=2, 128-lane aligned stores).
    run_case(2, 8, 8, 32, 0)
    # Naturally aligned path (2C = 128): grp = 1.
    run_case(1, 8, 8, 64, 1)
    # Misaligned fallback path (2C = 96, wh not divisible by 4): grp = 1.
    run_case(1, 12, 12, 48, 2)

    print("KERNEL_OK")
</pallas_src>

<mosaic_0001>
module attributes {stable_mosaic.version = 11 : i64} {
  func.func @_patch_merging_kernel(%arg0: i32, %arg1: memref<8x512xf32, #tpu.memory_space<vmem>>, %arg2: memref<128x64xf32, #tpu.memory_space<vmem>>, %arg3: memref<1x64xf32, #tpu.memory_space<vmem>>, %arg4: memref<8x256xf32, #tpu.memory_space<vmem>>) attributes {dimension_semantics = [#tpu.dimension_semantics<parallel>], iteration_bounds = array<i64: 1>, scalar_prefetch = 0 : i64, scratch_operands = 0 : i64, tpu.core_type = #tpu.core_type<tc>, window_params = [{transform_indices = @transform_0, window_bounds = array<i64: 8, 512>}, {pipeline_mode = #tpu.pipeline_mode<synchronous>, transform_indices = @transform_1, window_bounds = array<i64: 128, 64>}, {pipeline_mode = #tpu.pipeline_mode<synchronous>, transform_indices = @transform_2, window_bounds = array<i64: 1, 64>}, {transform_indices = @transform_3, window_bounds = array<i64: 8, 256>}]} {
    %c0 = arith.constant 0 : index
    %c0_0 = arith.constant 0 : index
    %0 = vector.load %arg2[%c0, %c0_0] : memref<128x64xf32, #tpu.memory_space<vmem>>, vector<128x64xf32>
    %c0_1 = arith.constant 0 : index
    %c0_2 = arith.constant 0 : index
    %1 = vector.load %arg3[%c0_1, %c0_2] : memref<1x64xf32, #tpu.memory_space<vmem>>, vector<1x64xf32>
    %c0_3 = arith.constant 0 : index
    %c0_4 = arith.constant 0 : index
    %2 = vector.load %arg1[%c0_3, %c0_4] : memref<8x512xf32, #tpu.memory_space<vmem>>, vector<8x128xf32>
    %c0_5 = arith.constant 0 : index
    %c256 = arith.constant 256 : index
    %3 = vector.load %arg1[%c0_5, %c256] : memref<8x512xf32, #tpu.memory_space<vmem>>, vector<8x128xf32>
    %4 = vector.extract_strided_slice %2 {offsets = [0, 0], sizes = [8, 64], strides = [1, 1]} : vector<8x128xf32> to vector<8x64xf32>
    %5 = vector.extract_strided_slice %3 {offsets = [0, 0], sizes = [8, 64], strides = [1, 1]} : vector<8x128xf32> to vector<8x64xf32>
    %6 = tpu.concatenate %4, %5 in 1 : vector<8x64xf32>, vector<8x64xf32> -> vector<8x128xf32>
    %cst = arith.constant dense<0.000000e+00> : vector<8xf32>
    %7 = vector.multi_reduction <add>, %6, %cst [1] : vector<8x128xf32> to vector<8xf32>
    %8 = vector.shape_cast %7 : vector<8xf32> to vector<8x1xf32>
    %9 = arith.mulf %6, %6 : vector<8x128xf32>
    %cst_6 = arith.constant dense<0.000000e+00> : vector<8xf32>
    %10 = vector.multi_reduction <add>, %9, %cst_6 [1] : vector<8x128xf32> to vector<8xf32>
    %11 = vector.shape_cast %10 : vector<8xf32> to vector<8x1xf32>
    %cst_7 = arith.constant 7.812500e-03 : f32
    %12 = vector.broadcast %cst_7 : f32 to vector<8x1xf32>
    %13 = arith.mulf %8, %12 : vector<8x1xf32>
    %cst_8 = arith.constant 7.812500e-03 : f32
    %14 = vector.broadcast %cst_8 : f32 to vector<8x1xf32>
    %15 = arith.mulf %11, %14 : vector<8x1xf32>
    %16 = arith.mulf %13, %13 : vector<8x1xf32>
    %17 = arith.subf %15, %16 : vector<8x1xf32>
    %cst_9 = arith.constant 0.000000e+00 : f32
    %18 = vector.broadcast %cst_9 : f32 to vector<8x1xf32>
    %19 = arith.maximumf %17, %18 : vector<8x1xf32>
    %cst_10 = arith.constant 9.99999974E-6 : f32
    %20 = vector.broadcast %cst_10 : f32 to vector<8x1xf32>
    %21 = arith.addf %19, %20 : vector<8x1xf32>
    %22 = math.rsqrt %21 : vector<8x1xf32>
    %23 = vector.broadcast %13 : vector<8x1xf32> to vector<8x128xf32>
    %24 = arith.subf %6, %23 : vector<8x128xf32>
    %25 = vector.broadcast %22 : vector<8x1xf32> to vector<8x128xf32>
    %26 = arith.mulf %24, %25 : vector<8x128xf32>
    %cst_11 = arith.constant dense<0.000000e+00> : vector<8x64xf32>
    %27 = tpu.matmul %26, %0, %cst_11 {dimension_numbers = #tpu.dot_dimension_numbers<[1], [0], [0], [1], [0, 0, 1, 1], [], []>} : vector<8x128xf32>, vector<128x64xf32>, vector<8x64xf32> -> vector<8x64xf32>
    %28 = vector.broadcast %1 : vector<1x64xf32> to vector<8x64xf32>
    %29 = arith.addf %27, %28 : vector<8x64xf32>
    %30 = vector.extract_strided_slice %2 {offsets = [0, 64], sizes = [8, 64], strides = [1, 1]} : vector<8x128xf32> to vector<8x64xf32>
    %31 = vector.extract_strided_slice %3 {offsets = [0, 64], sizes = [8, 64], strides = [1, 1]} : vector<8x128xf32> to vector<8x64xf32>
    %32 = tpu.concatenate %30, %31 in 1 : vector<8x64xf32>, vector<8x64xf32> -> vector<8x128xf32>
    %cst_12 = arith.constant dense<0.000000e+00> : vector<8xf32>
    %33 = vector.multi_reduction <add>, %32, %cst_12 [1] : vector<8x128xf32> to vector<8xf32>
    %34 = vector.shape_cast %33 : vector<8xf32> to vector<8x1xf32>
    %35 = arith.mulf %32, %32 : vector<8x128xf32>
    %cst_13 = arith.constant dense<0.000000e+00> : vector<8xf32>
    %36 = vector.multi_reduction <add>, %35, %cst_13 [1] : vector<8x128xf32> to vector<8xf32>
    %37 = vector.shape_cast %36 : vector<8xf32> to vector<8x1xf32>
    %cst_14 = arith.constant 7.812500e-03 : f32
    %38 = vector.broadcast %cst_14 : f32 to vector<8x1xf32>
    %39 = arith.mulf %34, %38 : vector<8x1xf32>
    %cst_15 = arith.constant 7.812500e-03 : f32
    %40 = vector.broadcast %cst_15 : f32 to vector<8x1xf32>
    %41 = arith.mulf %37, %40 : vector<8x1xf32>
    %42 = arith.mulf %39, %39 : vector<8x1xf32>
    %43 = arith.subf %41, %42 : vector<8x1xf32>
    %cst_16 = arith.constant 0.000000e+00 : f32
    %44 = vector.broadcast %cst_16 : f32 to vector<8x1xf32>
    %45 = arith.maximumf %43, %44 : vector<8x1xf32>
    %cst_17 = arith.constant 9.99999974E-6 : f32
    %46 = vector.broadcast %cst_17 : f32 to vector<8x1xf32>
    %47 = arith.addf %45, %46 : vector<8x1xf32>
    %48 = math.rsqrt %47 : vector<8x1xf32>
    %49 = vector.broadcast %39 : vector<8x1xf32> to vector<8x128xf32>
    %50 = arith.subf %32, %49 : vector<8x128xf32>
    %51 = vector.broadcast %48 : vector<8x1xf32> to vector<8x128xf32>
    %52 = arith.mulf %50, %51 : vector<8x128xf32>
    %cst_18 = arith.constant dense<0.000000e+00> : vector<8x64xf32>
    %53 = tpu.matmul %52, %0, %cst_18 {dimension_numbers = #tpu.dot_dimension_numbers<[1], [0], [0], [1], [0, 0, 1, 1], [], []>} : vector<8x128xf32>, vector<128x64xf32>, vector<8x64xf32> -> vector<8x64xf32>
    %54 = vector.broadcast %1 : vector<1x64xf32> to vector<8x64xf32>
    %55 = arith.addf %53, %54 : vector<8x64xf32>
    %56 = tpu.concatenate %29, %55 in 1 : vector<8x64xf32>, vector<8x64xf32> -> vector<8x128xf32>
    %c0_19 = arith.constant 0 : index
    %c0_20 = arith.constant 0 : index
    %57 = vector.load %arg4[%c0_19, %c0_20] : memref<8x256xf32, #tpu.memory_space<vmem>>, vector<8x128xf32>
    tpu.vector_store %arg4[%c0_19, %c0_20], %56 {strides = array<i32>} : memref<8x256xf32, #tpu.memory_space<vmem>>, vector<8x128xf32>,
    %c0_21 = arith.constant 0 : index
    %c128 = arith.constant 128 : index
    %58 = vector.load %arg1[%c0_21, %c128] : memref<8x512xf32, #tpu.memory_space<vmem>>, vector<8x128xf32>
    %c0_22 = arith.constant 0 : index
    %c384 = arith.constant 384 : index
    %59 = vector.load %arg1[%c0_22, %c384] : memref<8x512xf32, #tpu.memory_space<vmem>>, vector<8x128xf32>
    %60 = vector.extract_strided_slice %58 {offsets = [0, 0], sizes = [8, 64], strides = [1, 1]} : vector<8x128xf32> to vector<8x64xf32>
    %61 = vector.extract_strided_slice %59 {offsets = [0, 0], sizes = [8, 64], strides = [1, 1]} : vector<8x128xf32> to vector<8x64xf32>
    %62 = tpu.concatenate %60, %61 in 1 : vector<8x64xf32>, vector<8x64xf32> -> vector<8x128xf32>
    %cst_23 = arith.constant dense<0.000000e+00> : vector<8xf32>
    %63 = vector.multi_reduction <add>, %62, %cst_23 [1] : vector<8x128xf32> to vector<8xf32>
    %64 = vector.shape_cast %63 : vector<8xf32> to vector<8x1xf32>
    %65 = arith.mulf %62, %62 : vector<8x128xf32>
    %cst_24 = arith.constant dense<0.000000e+00> : vector<8xf32>
    %66 = vector.multi_reduction <add>, %65, %cst_24 [1] : vector<8x128xf32> to vector<8xf32>
    %67 = vector.shape_cast %66 : vector<8xf32> to vector<8x1xf32>
    %cst_25 = arith.constant 7.812500e-03 : f32
    %68 = vector.broadcast %cst_25 : f32 to vector<8x1xf32>
    %69 = arith.mulf %64, %68 : vector<8x1xf32>
    %cst_26 = arith.constant 7.812500e-03 : f32
    %70 = vector.broadcast %cst_26 : f32 to vector<8x1xf32>
    %71 = arith.mulf %67, %70 : vector<8x1xf32>
    %72 = arith.mulf %69, %69 : vector<8x1xf32>
    %73 = arith.subf %71, %72 : vector<8x1xf32>
    %cst_27 = arith.constant 0.000000e+00 : f32
    %74 = vector.broadcast %cst_27 : f32 to vector<8x1xf32>
    %75 = arith.maximumf %73, %74 : vector<8x1xf32>
    %cst_28 = arith.constant 9.99999974E-6 : f32
    %76 = vector.broadcast %cst_28 : f32 to vector<8x1xf32>
    %77 = arith.addf %75, %76 : vector<8x1xf32>
    %78 = math.rsqrt %77 : vector<8x1xf32>
    %79 = vector.broadcast %69 : vector<8x1xf32> to vector<8x128xf32>
    %80 = arith.subf %62, %79 : vector<8x128xf32>
    %81 = vector.broadcast %78 : vector<8x1xf32> to vector<8x128xf32>
    %82 = arith.mulf %80, %81 : vector<8x128xf32>
    %cst_29 = arith.constant dense<0.000000e+00> : vector<8x64xf32>
    %83 = tpu.matmul %82, %0, %cst_29 {dimension_numbers = #tpu.dot_dimension_numbers<[1], [0], [0], [1], [0, 0, 1, 1], [], []>} : vector<8x128xf32>, vector<128x64xf32>, vector<8x64xf32> -> vector<8x64xf32>
    %84 = vector.broadcast %1 : vector<1x64xf32> to vector<8x64xf32>
    %85 = arith.addf %83, %84 : vector<8x64xf32>
    %86 = vector.extract_strided_slice %58 {offsets = [0, 64], sizes = [8, 64], strides = [1, 1]} : vector<8x128xf32> to vector<8x64xf32>
    %87 = vector.extract_strided_slice %59 {offsets = [0, 64], sizes = [8, 64], strides = [1, 1]} : vector<8x128xf32> to vector<8x64xf32>
    %88 = tpu.concatenate %86, %87 in 1 : vector<8x64xf32>, vector<8x64xf32> -> vector<8x128xf32>
    %cst_30 = arith.constant dense<0.000000e+00> : vector<8xf32>
    %89 = vector.multi_reduction <add>, %88, %cst_30 [1] : vector<8x128xf32> to vector<8xf32>
    %90 = vector.shape_cast %89 : vector<8xf32> to vector<8x1xf32>
    %91 = arith.mulf %88, %88 : vector<8x128xf32>
    %cst_31 = arith.constant dense<0.000000e+00> : vector<8xf32>
    %92 = vector.multi_reduction <add>, %91, %cst_31 [1] : vector<8x128xf32> to vector<8xf32>
    %93 = vector.shape_cast %92 : vector<8xf32> to vector<8x1xf32>
    %cst_32 = arith.constant 7.812500e-03 : f32
    %94 = vector.broadcast %cst_32 : f32 to vector<8x1xf32>
    %95 = arith.mulf %90, %94 : vector<8x1xf32>
    %cst_33 = arith.constant 7.812500e-03 : f32
    %96 = vector.broadcast %cst_33 : f32 to vector<8x1xf32>
    %97 = arith.mulf %93, %96 : vector<8x1xf32>
    %98 = arith.mulf %95, %95 : vector<8x1xf32>
    %99 = arith.subf %97, %98 : vector<8x1xf32>
    %cst_34 = arith.constant 0.000000e+00 : f32
    %100 = vector.broadcast %cst_34 : f32 to vector<8x1xf32>
    %101 = arith.maximumf %99, %100 : vector<8x1xf32>
    %cst_35 = arith.constant 9.99999974E-6 : f32
    %102 = vector.broadcast %cst_35 : f32 to vector<8x1xf32>
    %103 = arith.addf %101, %102 : vector<8x1xf32>
    %104 = math.rsqrt %103 : vector<8x1xf32>
    %105 = vector.broadcast %95 : vector<8x1xf32> to vector<8x128xf32>
    %106 = arith.subf %88, %105 : vector<8x128xf32>
    %107 = vector.broadcast %104 : vector<8x1xf32> to vector<8x128xf32>
    %108 = arith.mulf %106, %107 : vector<8x128xf32>
    %cst_36 = arith.constant dense<0.000000e+00> : vector<8x64xf32>
    %109 = tpu.matmul %108, %0, %cst_36 {dimension_numbers = #tpu.dot_dimension_numbers<[1], [0], [0], [1], [0, 0, 1, 1], [], []>} : vector<8x128xf32>, vector<128x64xf32>, vector<8x64xf32> -> vector<8x64xf32>
    %110 = vector.broadcast %1 : vector<1x64xf32> to vector<8x64xf32>
    %111 = arith.addf %109, %110 : vector<8x64xf32>
    %112 = tpu.concatenate %85, %111 in 1 : vector<8x64xf32>, vector<8x64xf32> -> vector<8x128xf32>
    %c0_37 = arith.constant 0 : index
    %c128_38 = arith.constant 128 : index
    %113 = vector.load %arg4[%c0_37, %c128_38] : memref<8x256xf32, #tpu.memory_space<vmem>>, vector<8x128xf32>
    tpu.vector_store %arg4[%c0_37, %c128_38], %112 {strides = array<i32>} : memref<8x256xf32, #tpu.memory_space<vmem>>, vector<8x128xf32>,
    return
  }
  func.func @transform_0(%arg0: i32) -> (i32, i32) {
    %c0_i32 = arith.constant 0 : i32
    %c0_i32_0 = arith.constant 0 : i32
    return %arg0, %c0_i32 : i32, i32
  }
  func.func @transform_1(%arg0: i32) -> (i32, i32) {
    %c0_i32 = arith.constant 0 : i32
    %c0_i32_0 = arith.constant 0 : i32
    %c0_i32_1 = arith.constant 0 : i32
    return %c0_i32, %c0_i32_0 : i32, i32
  }
  func.func @transform_2(%arg0: i32) -> (i32, i32) {
    %c0_i32 = arith.constant 0 : i32
    %c0_i32_0 = arith.constant 0 : i32
    %c0_i32_1 = arith.constant 0 : i32
    return %c0_i32, %c0_i32_0 : i32, i32
  }
  func.func @transform_3(%arg0: i32) -> (i32, i32) {
    %c0_i32 = arith.constant 0 : i32
    %c0_i32_0 = arith.constant 0 : i32
    return %arg0, %c0_i32 : i32, i32
  }
}

</mosaic_0001>

<llo_original>
// kernel: tpu_custom_call.1
$region0: #{tpu_custom_call.1}
  #allocation0 [shape = 'u32[]', space=smem, size = 0x4, offset = 0x4, fixed_abs, tag = 'smem constant byte address 0x4 - core index']
  #allocation1 [shape = 'u32[144,128]{1,0:T(1,128)}', space=vmem, size = 0x12000, scoped, tag = 'internal scratch']
  %s0 = inlined_call_operand.vmem [shape: f32[8,512], index: 0, kind: input, shape index: {}]
  %s1 = inlined_call_operand.vmem [shape: f32[128,64], index: 1, kind: input, shape index: {}]
  %s2 = inlined_call_operand.vmem [shape: f32[1,64], index: 2, kind: input, shape index: {}]
  %s3 = inlined_call_operand.hbm [shape: f32[8,256], index: 3, kind: output, shape index: {}]
  %s4 = sld [smem:[#allocation0]]
  $region22: #{tpu_custom_call.1} parent=0
    _
  %s6 = ssub.s32 1, %s4
  %s7 = scalar_select 0, %s6, %s4
  $region1: #{tpu_custom_call.1} parent=0
    #allocation2 [shape = 'u8[8192]{0}', space=vmem, size = 0x2000, scoped, tag = 'output window, operand 0, single buffered']
    #allocation3 [shape = 's32[1]{0}', space=sflag, size = 0x4, scoped, tag = 'scoped memory for tpu_custom_call.1']
    %8 = vsyncpa [#allocation3], 0
    // Predicated region
    $region2: #{tpu_custom_call.1} parent=1 // pred_check
      _
    $region3: #{tpu_custom_call.1} parent=1 // pred_check_branch
      %10 = sbr.rel (0) target = $region5
    $region4: #{tpu_custom_call.1} parent=1 // pred_region
      _
    $region5: #{tpu_custom_call.1} parent=1 // pred_fallthru
      _
    // Predicated region
    $region6: #{tpu_custom_call.1} parent=1 // pred_check
      _
    $region7: #{tpu_custom_call.1} parent=1 // pred_check_branch
      %12 = sbr.rel (0) target = $region9
    $region8: #{tpu_custom_call.1} parent=1 // pred_region
      _
    $region9: #{tpu_custom_call.1} parent=1 // pred_fallthru
      _
    // Predicated region
    $region10: #{tpu_custom_call.1} parent=1 // pred_check
      _
    $region11: #{tpu_custom_call.1} parent=1 // pred_check_branch
      %14 = sbr.rel (0) target = $region13
    $region12: #{tpu_custom_call.1} parent=1 // pred_region
      _
    $region13: #{tpu_custom_call.1} parent=1 // pred_fallthru
      _
    %v15 = vld [vmem:[%s1] sm:$0xff]
    %v16 = vld [vmem:[%s1 + $0x8] sm:$0xff]
    %v17 = vld [vmem:[%s1 + $0x10] sm:$0xff]
    %v18 = vld [vmem:[%s1 + $0x18] sm:$0xff]
    %v19 = vld [vmem:[%s1 + $0x20] sm:$0xff]
    %v20 = vld [vmem:[%s1 + $0x28] sm:$0xff]
    %v21 = vld [vmem:[%s1 + $0x30] sm:$0xff]
    %v22 = vld [vmem:[%s1 + $0x38] sm:$0xff]
    %v23 = vld [vmem:[%s1 + $0x40] sm:$0xff]
    %v24 = vld [vmem:[%s1 + $0x48] sm:$0xff]
    %v25 = vld [vmem:[%s1 + $0x50] sm:$0xff]
    %v26 = vld [vmem:[%s1 + $0x58] sm:$0xff]
    %v27 = vld [vmem:[%s1 + $0x60] sm:$0xff]
    %v28 = vld [vmem:[%s1 + $0x68] sm:$0xff]
    %v29 = vld [vmem:[%s1 + $0x70] sm:$0xff]
    %v30 = vld [vmem:[%s1 + $0x78] sm:$0xff]
    %v31 = vld [vmem:[%s2] sm:$0x1]
    %v32 = vld [vmem:[%s0] sm:$0xff]
    %v33 = vld [vmem:[%s0 + $0x10] sm:$0xff]
    %35 = vrot.lane.b32.xlu0 %v33, 64
    %v36 = vpop.permute.xlu0 %35
    %vm38 = vcmask 523264
    %v39 = vsel %vm38, %v32, %v36
    %40 = vadd.xlane.f32.xlu0 %v39
    %v41 = vpop.xlane.xlu0 %40
    %v42 = vmul.f32 %v39, %v39
    %43 = vadd.xlane.f32.xlu0 %v42
    %v44 = vpop.xlane.xlu0 %43
    %v45 = vmul.f32 %v41, 0.0078125
    %v46 = vmul.f32 %v44, 0.0078125
    %v47 = vmul.f32 %v45, %v45
    %v48 = vsub.f32 %v46, %v47
    %v49 = vmax.f32 %v48, 0.0
    %v50 = vadd.f32 %v49, 1e-05
    %v51 = vrsqrt.pop %v50
    %v52 = vsub.f32 %v39, %v45
    %v53 = vmul.f32 %v52, %v51
    %v55 = vlaneseq
    %v56 = vshrl.u32 %v55, 7
    %v57 = vsub.s32 0, %v56
    %v58 = vrot.slane %v31, %v57
    %60 = vmatprep.subr.mxu0 0.0
    %61 = vmatpush1.msra.mxu0 %v30
    %62 = vmatprep.subr.mxu0 0.0
    %63 = vmatpush1.msra.mxu0 %v29
    %64 = vmatprep.subr.mxu0 0.0
    %65 = vmatpush1.msra.mxu0 %v28
    %66 = vmatprep.subr.mxu0 0.0
    %67 = vmatpush1.msra.mxu0 %v27
    %68 = vmatprep.subr.mxu0 0.0
    %69 = vmatpush1.msra.mxu0 %v26
    %70 = vmatprep.subr.mxu0 0.0
    %71 = vmatpush1.msra.mxu0 %v25
    %72 = vmatprep.subr.mxu0 0.0
    %73 = vmatpush1.msra.mxu0 %v24
    %74 = vmatprep.subr.mxu0 0.0
    %75 = vmatpush1.msra.mxu0 %v23
    %76 = vmatprep.subr.mxu0 0.0
    %77 = vmatpush1.msra.mxu0 %v22
    %78 = vmatprep.subr.mxu0 0.0
    %79 = vmatpush1.msra.mxu0 %v21
    %80 = vmatprep.subr.mxu0 0.0
    %81 = vmatpush1.msra.mxu0 %v20
    %82 = vmatprep.subr.mxu0 0.0
    %83 = vmatpush1.msra.mxu0 %v19
    %84 = vmatprep.subr.mxu0 0.0
    %85 = vmatpush1.msra.mxu0 %v18
    %86 = vmatprep.subr.mxu0 0.0
    %87 = vmatpush1.msra.mxu0 %v17
    %88 = vmatprep.subr.mxu0 0.0
    %89 = vmatpush1.msra.mxu0 %v16
    %90 = vmatprep.subr.mxu0 0.0
    %91 = vmatpush1.msra.mxu0 %v15
    %92 = vmatprep.subr.mxu0 0.0
    %93 = vmatpush2.msra.mxu0 0.0
    %94 = vmatprep.subr.mxu0 0.0
    %95 = vmatpush2.msra.mxu0 0.0
    %96 = vmatprep.subr.mxu0 0.0
    %97 = vmatpush2.msra.mxu0 0.0
    %98 = vmatprep.subr.mxu0 0.0
    %99 = vmatpush2.msra.mxu0 0.0
    %100 = vmatprep.subr.mxu0 0.0
    %101 = vmatpush2.msra.mxu0 0.0
    %102 = vmatprep.subr.mxu0 0.0
    %103 = vmatpush2.msra.mxu0 0.0
    %104 = vmatprep.subr.mxu0 0.0
    %105 = vmatpush2.msra.mxu0 0.0
    %106 = vmatprep.subr.mxu0 0.0
    %107 = vmatpush2.msra.mxu0 0.0
    %108 = vmatprep.subr.mxu0 0.0
    %109 = vmatpush2.msra.mxu0 0.0
    %110 = vmatprep.subr.mxu0 0.0
    %111 = vmatpush2.msra.mxu0 0.0
    %112 = vmatprep.subr.mxu0 0.0
    %113 = vmatpush2.msra.mxu0 0.0
    %114 = vmatprep.subr.mxu0 0.0
    %115 = vmatpush2.msra.mxu0 0.0
    %116 = vmatprep.subr.mxu0 0.0
    %117 = vmatpush2.msra.mxu0 0.0
    %118 = vmatprep.subr.mxu0 0.0
    %119 = vmatpush2.msra.mxu0 0.0
    %120 = vmatprep.subr.mxu0 0.0
    %121 = vmatpush2.msra.mxu0 0.0
    %122 = vmatprep.subr.mxu0 0.0
    %123 = vmatpush2.msra.mxu0 0.0
    %124 = vmatprep.mubr.f32.mxu0 0.0
    %125 = vmatmul.mubr.f32.gmra.mxu0 %v53
    %v126 = vpop.f32.mrf.mxu0
    %v127 = vadd.f32 %v58, %v126
    %v128 = vpop.f32.mrf.mxu0
    %129 = vdwg.mxu0
    %131 = vrot.lane.b32.xlu0 %v32, 64
    %v132 = vpop.permute.xlu0 %131
    %v134 = vsel %vm38, %v132, %v33
    %135 = vadd.xlane.f32.xlu0 %v134
    %v136 = vpop.xlane.xlu0 %135
    %v137 = vmul.f32 %v134, %v134
    %138 = vadd.xlane.f32.xlu0 %v137
    %v139 = vpop.xlane.xlu0 %138
    %v140 = vmul.f32 %v136, 0.0078125
    %v141 = vmul.f32 %v139, 0.0078125
    %v142 = vmul.f32 %v140, %v140
    %v143 = vsub.f32 %v141, %v142
    %v144 = vmax.f32 %v143, 0.0
    %v145 = vadd.f32 %v144, 1e-05
    %v146 = vrsqrt.pop %v145
    %v147 = vsub.f32 %v134, %v140
    %v148 = vmul.f32 %v147, %v146
    %149 = vmatprep.subr.mxu0 0.0
    %150 = vmatpush1.msra.mxu0 %v30
    %151 = vmatprep.subr.mxu0 0.0
    %152 = vmatpush1.msra.mxu0 %v29
    %153 = vmatprep.subr.mxu0 0.0
    %154 = vmatpush1.msra.mxu0 %v28
    %155 = vmatprep.subr.mxu0 0.0
    %156 = vmatpush1.msra.mxu0 %v27
    %157 = vmatprep.subr.mxu0 0.0
    %158 = vmatpush1.msra.mxu0 %v26
    %159 = vmatprep.subr.mxu0 0.0
    %160 = vmatpush1.msra.mxu0 %v25
    %161 = vmatprep.subr.mxu0 0.0
    %162 = vmatpush1.msra.mxu0 %v24
    %163 = vmatprep.subr.mxu0 0.0
    %164 = vmatpush1.msra.mxu0 %v23
    %165 = vmatprep.subr.mxu0 0.0
    %166 = vmatpush1.msra.mxu0 %v22
    %167 = vmatprep.subr.mxu0 0.0
    %168 = vmatpush1.msra.mxu0 %v21
    %169 = vmatprep.subr.mxu0 0.0
    %170 = vmatpush1.msra.mxu0 %v20
    %171 = vmatprep.subr.mxu0 0.0
    %172 = vmatpush1.msra.mxu0 %v19
    %173 = vmatprep.subr.mxu0 0.0
    %174 = vmatpush1.msra.mxu0 %v18
    %175 = vmatprep.subr.mxu0 0.0
    %176 = vmatpush1.msra.mxu0 %v17
    %177 = vmatprep.subr.mxu0 0.0
    %178 = vmatpush1.msra.mxu0 %v16
    %179 = vmatprep.subr.mxu0 0.0
    %180 = vmatpush1.msra.mxu0 %v15
    %181 = vmatprep.subr.mxu0 0.0
    %182 = vmatpush2.msra.mxu0 0.0
    %183 = vmatprep.subr.mxu0 0.0
    %184 = vmatpush2.msra.mxu0 0.0
    %185 = vmatprep.subr.mxu0 0.0
    %186 = vmatpush2.msra.mxu0 0.0
    %187 = vmatprep.subr.mxu0 0.0
    %188 = vmatpush2.msra.mxu0 0.0
    %189 = vmatprep.subr.mxu0 0.0
    %190 = vmatpush2.msra.mxu0 0.0
    %191 = vmatprep.subr.mxu0 0.0
    %192 = vmatpush2.msra.mxu0 0.0
    %193 = vmatprep.subr.mxu0 0.0
    %194 = vmatpush2.msra.mxu0 0.0
    %195 = vmatprep.subr.mxu0 0.0
    %196 = vmatpush2.msra.mxu0 0.0
    %197 = vmatprep.subr.mxu0 0.0
    %198 = vmatpush2.msra.mxu0 0.0
    %199 = vmatprep.subr.mxu0 0.0
    %200 = vmatpush2.msra.mxu0 0.0
    %201 = vmatprep.subr.mxu0 0.0
    %202 = vmatpush2.msra.mxu0 0.0
    %203 = vmatprep.subr.mxu0 0.0
    %204 = vmatpush2.msra.mxu0 0.0
    %205 = vmatprep.subr.mxu0 0.0
    %206 = vmatpush2.msra.mxu0 0.0
    %207 = vmatprep.subr.mxu0 0.0
    %208 = vmatpush2.msra.mxu0 0.0
    %209 = vmatprep.subr.mxu0 0.0
    %210 = vmatpush2.msra.mxu0 0.0
    %211 = vmatprep.subr.mxu0 0.0
    %212 = vmatpush2.msra.mxu0 0.0
    %213 = vmatprep.mubr.f32.mxu0 0.0
    %214 = vmatmul.mubr.f32.gmra.mxu0 %v148
    %v215 = vpop.f32.mrf.mxu0
    %v216 = vadd.f32 %v58, %v215
    %v217 = vpop.f32.mrf.mxu0
    %218 = vdwg.mxu0
    %220 = vrot.lane.b32.xlu0 %v216, 64
    %v221 = vpop.permute.xlu0 %220
    %v223 = vsel %vm38, %v127, %v221
    %224 = vst [vmem:[#allocation2] sm:$0xff] %v223
    %v225 = vld [vmem:[%s0 + $0x8] sm:$0xff]
    %v226 = vld [vmem:[%s0 + $0x18] sm:$0xff]
    %228 = vrot.lane.b32.xlu0 %v226, 64
    %v229 = vpop.permute.xlu0 %228
    %v231 = vsel %vm38, %v225, %v229
    %232 = vadd.xlane.f32.xlu0 %v231
    %v233 = vpop.xlane.xlu0 %232
    %v234 = vmul.f32 %v231, %v231
    %235 = vadd.xlane.f32.xlu0 %v234
    %v236 = vpop.xlane.xlu0 %235
    %v237 = vmul.f32 %v233, 0.0078125
    %v238 = vmul.f32 %v236, 0.0078125
    %v239 = vmul.f32 %v237, %v237
    %v240 = vsub.f32 %v238, %v239
    %v241 = vmax.f32 %v240, 0.0
    %v242 = vadd.f32 %v241, 1e-05
    %v243 = vrsqrt.pop %v242
    %v244 = vsub.f32 %v231, %v237
    %v245 = vmul.f32 %v244, %v243
    %246 = vmatprep.subr.mxu0 0.0
    %247 = vmatpush1.msra.mxu0 %v30
    %248 = vmatprep.subr.mxu0 0.0
    %249 = vmatpush1.msra.mxu0 %v29
    %250 = vmatprep.subr.mxu0 0.0
    %251 = vmatpush1.msra.mxu0 %v28
    %252 = vmatprep.subr.mxu0 0.0
    %253 = vmatpush1.msra.mxu0 %v27
    %254 = vmatprep.subr.mxu0 0.0
    %255 = vmatpush1.msra.mxu0 %v26
    %256 = vmatprep.subr.mxu0 0.0
    %257 = vmatpush1.msra.mxu0 %v25
    %258 = vmatprep.subr.mxu0 0.0
    %259 = vmatpush1.msra.mxu0 %v24
    %260 = vmatprep.subr.mxu0 0.0
    %261 = vmatpush1.msra.mxu0 %v23
    %262 = vmatprep.subr.mxu0 0.0
    %263 = vmatpush1.msra.mxu0 %v22
    %264 = vmatprep.subr.mxu0 0.0
    %265 = vmatpush1.msra.mxu0 %v21
    %266 = vmatprep.subr.mxu0 0.0
    %267 = vmatpush1.msra.mxu0 %v20
    %268 = vmatprep.subr.mxu0 0.0
    %269 = vmatpush1.msra.mxu0 %v19
    %270 = vmatprep.subr.mxu0 0.0
    %271 = vmatpush1.msra.mxu0 %v18
    %272 = vmatprep.subr.mxu0 0.0
    %273 = vmatpush1.msra.mxu0 %v17
    %274 = vmatprep.subr.mxu0 0.0
    %275 = vmatpush1.msra.mxu0 %v16
    %276 = vmatprep.subr.mxu0 0.0
    %277 = vmatpush1.msra.mxu0 %v15
    %278 = vmatprep.subr.mxu0 0.0
    %279 = vmatpush2.msra.mxu0 0.0
    %280 = vmatprep.subr.mxu0 0.0
    %281 = vmatpush2.msra.mxu0 0.0
    %282 = vmatprep.subr.mxu0 0.0
    %283 = vmatpush2.msra.mxu0 0.0
    %284 = vmatprep.subr.mxu0 0.0
    %285 = vmatpush2.msra.mxu0 0.0
    %286 = vmatprep.subr.mxu0 0.0
    %287 = vmatpush2.msra.mxu0 0.0
    %288 = vmatprep.subr.mxu0 0.0
    %289 = vmatpush2.msra.mxu0 0.0
    %290 = vmatprep.subr.mxu0 0.0
    %291 = vmatpush2.msra.mxu0 0.0
    %292 = vmatprep.subr.mxu0 0.0
    %293 = vmatpush2.msra.mxu0 0.0
    %294 = vmatprep.subr.mxu0 0.0
    %295 = vmatpush2.msra.mxu0 0.0
    %296 = vmatprep.subr.mxu0 0.0
    %297 = vmatpush2.msra.mxu0 0.0
    %298 = vmatprep.subr.mxu0 0.0
    %299 = vmatpush2.msra.mxu0 0.0
    %300 = vmatprep.subr.mxu0 0.0
    %301 = vmatpush2.msra.mxu0 0.0
    %302 = vmatprep.subr.mxu0 0.0
    %303 = vmatpush2.msra.mxu0 0.0
    %304 = vmatprep.subr.mxu0 0.0
    %305 = vmatpush2.msra.mxu0 0.0
    %306 = vmatprep.subr.mxu0 0.0
    %307 = vmatpush2.msra.mxu0 0.0
    %308 = vmatprep.subr.mxu0 0.0
    %309 = vmatpush2.msra.mxu0 0.0
    %310 = vmatprep.mubr.f32.mxu0 0.0
    %311 = vmatmul.mubr.f32.gmra.mxu0 %v245
    %v312 = vpop.f32.mrf.mxu0
    %v313 = vadd.f32 %v58, %v312
    %v314 = vpop.f32.mrf.mxu0
    %315 = vdwg.mxu0
    %317 = vrot.lane.b32.xlu0 %v225, 64
    %v318 = vpop.permute.xlu0 %317
    %v320 = vsel %vm38, %v318, %v226
    %321 = vadd.xlane.f32.xlu0 %v320
    %v322 = vpop.xlane.xlu0 %321
    %v323 = vmul.f32 %v320, %v320
    %324 = vadd.xlane.f32.xlu0 %v323
    %v325 = vpop.xlane.xlu0 %324
    %v326 = vmul.f32 %v322, 0.0078125
    %v327 = vmul.f32 %v325, 0.0078125
    %v328 = vmul.f32 %v326, %v326
    %v329 = vsub.f32 %v327, %v328
    %v330 = vmax.f32 %v329, 0.0
    %v331 = vadd.f32 %v330, 1e-05
    %v332 = vrsqrt.pop %v331
    %v333 = vsub.f32 %v320, %v326
    %v334 = vmul.f32 %v333, %v332
    %335 = vmatprep.subr.mxu0 0.0
    %336 = vmatpush1.msra.mxu0 %v30
    %337 = vmatprep.subr.mxu0 0.0
    %338 = vmatpush1.msra.mxu0 %v29
    %339 = vmatprep.subr.mxu0 0.0
    %340 = vmatpush1.msra.mxu0 %v28
    %341 = vmatprep.subr.mxu0 0.0
    %342 = vmatpush1.msra.mxu0 %v27
    %343 = vmatprep.subr.mxu0 0.0
    %344 = vmatpush1.msra.mxu0 %v26
    %345 = vmatprep.subr.mxu0 0.0
    %346 = vmatpush1.msra.mxu0 %v25
    %347 = vmatprep.subr.mxu0 0.0
    %348 = vmatpush1.msra.mxu0 %v24
    %349 = vmatprep.subr.mxu0 0.0
    %350 = vmatpush1.msra.mxu0 %v23
    %351 = vmatprep.subr.mxu0 0.0
    %352 = vmatpush1.msra.mxu0 %v22
    %353 = vmatprep.subr.mxu0 0.0
    %354 = vmatpush1.msra.mxu0 %v21
    %355 = vmatprep.subr.mxu0 0.0
    %356 = vmatpush1.msra.mxu0 %v20
    %357 = vmatprep.subr.mxu0 0.0
    %358 = vmatpush1.msra.mxu0 %v19
    %359 = vmatprep.subr.mxu0 0.0
    %360 = vmatpush1.msra.mxu0 %v18
    %361 = vmatprep.subr.mxu0 0.0
    %362 = vmatpush1.msra.mxu0 %v17
    %363 = vmatprep.subr.mxu0 0.0
    %364 = vmatpush1.msra.mxu0 %v16
    %365 = vmatprep.subr.mxu0 0.0
    %366 = vmatpush1.msra.mxu0 %v15
    %367 = vmatprep.subr.mxu0 0.0
    %368 = vmatpush2.msra.mxu0 0.0
    %369 = vmatprep.subr.mxu0 0.0
    %370 = vmatpush2.msra.mxu0 0.0
    %371 = vmatprep.subr.mxu0 0.0
    %372 = vmatpush2.msra.mxu0 0.0
    %373 = vmatprep.subr.mxu0 0.0
    %374 = vmatpush2.msra.mxu0 0.0
    %375 = vmatprep.subr.mxu0 0.0
    %376 = vmatpush2.msra.mxu0 0.0
    %377 = vmatprep.subr.mxu0 0.0
    %378 = vmatpush2.msra.mxu0 0.0
    %379 = vmatprep.subr.mxu0 0.0
    %380 = vmatpush2.msra.mxu0 0.0
    %381 = vmatprep.subr.mxu0 0.0
    %382 = vmatpush2.msra.mxu0 0.0
    %383 = vmatprep.subr.mxu0 0.0
    %384 = vmatpush2.msra.mxu0 0.0
    %385 = vmatprep.subr.mxu0 0.0
    %386 = vmatpush2.msra.mxu0 0.0
    %387 = vmatprep.subr.mxu0 0.0
    %388 = vmatpush2.msra.mxu0 0.0
    %389 = vmatprep.subr.mxu0 0.0
    %390 = vmatpush2.msra.mxu0 0.0
    %391 = vmatprep.subr.mxu0 0.0
    %392 = vmatpush2.msra.mxu0 0.0
    %393 = vmatprep.subr.mxu0 0.0
    %394 = vmatpush2.msra.mxu0 0.0
    %395 = vmatprep.subr.mxu0 0.0
    %396 = vmatpush2.msra.mxu0 0.0
    %397 = vmatprep.subr.mxu0 0.0
    %398 = vmatpush2.msra.mxu0 0.0
    %399 = vmatprep.mubr.f32.mxu0 0.0
    %400 = vmatmul.mubr.f32.gmra.mxu0 %v334
    %v401 = vpop.f32.mrf.mxu0
    %v402 = vadd.f32 %v58, %v401
    %v403 = vpop.f32.mrf.mxu0
    %404 = vdwg.mxu0
    %406 = vrot.lane.b32.xlu0 %v402, 64
    %v407 = vpop.permute.xlu0 %406
    %v409 = vsel %vm38, %v313, %v407
    %410 = vst [vmem:[#allocation2 + $0x8] sm:$0xff] %v409
    // Predicated region
    $region14: #{tpu_custom_call.1} parent=1 // pred_check
      _
    $region15: #{tpu_custom_call.1} parent=1 // pred_check_branch
      %412 = sbr.rel (0) target = $region17
    $region16: #{tpu_custom_call.1} parent=1 // pred_region
      %s414 = ssub.s32 256, 256
      %415 = vsyncadd [#allocation3], %s414
      %s417 = sshll.u32 [#allocation2], 4
      %s418 = int_to_ptr.vmem [resolvable:$true] %s417
      %420 = dma.vmem_to_hbm [thread:$0]  %s418, 256, %s3, [#allocation3]
    $region17: #{tpu_custom_call.1} parent=1 // pred_fallthru
      _
    // Predicated region
    $region18: #{tpu_custom_call.1} parent=1 // pred_check
      _
    $region19: #{tpu_custom_call.1} parent=1 // pred_check_branch
      %422 = sbr.rel (0) target = $region21
    $region20: #{tpu_custom_call.1} parent=1 // pred_region
      %423 = dma.done [#allocation3], 256
    $region21: #{tpu_custom_call.1} parent=1 // pred_fallthru
      _
    %424 = vsyncpa [#allocation3], 1

</llo_original>
